<compile_context>
chip_gen: v5e
topology: v5e:2x2
jax: 0.10.0
libtpu: 0.0.40
codegen_flags: <defaults>
</compile_context>

<pallas_src>
import jax
import jax.numpy as jnp
from jax.experimental import pallas as pl
from jax.experimental.pallas import tpu as pltpu


def _round_up(x, m):
    return ((x + m - 1) // m) * m


def _vmem_capacity_bytes():
    """Physical VMEM of the local TPU generation; conservative 64 MiB fallback."""
    try:
        info = pltpu.get_tpu_info()
        cap = getattr(info, "vmem_capacity_bytes", None)
        if cap:
            return int(cap)
    except Exception:
        pass
    return 64 * 1024 * 1024  # v7x-sized fallback is safe on every generation


def _vmem_footprint(tm, th, dm_p, do_p, x_isz, w_isz, o_isz):
    """Estimated VMEM bytes for one pipelined grid step (double buffers included)."""
    return (2 * tm * dm_p * x_isz          # x tiles (double-buffered)
            + 2 * 2 * dm_p * th * w_isz    # W_l, W_r tiles
            + 2 * th * do_p * w_isz        # W_p tiles
            + 2 * tm * do_p * o_isz        # out tiles
            + tm * do_p * 4                # f32 accumulator scratch
            + 3 * tm * th * 4)             # f32 left / right / h live values


def _select_tiles(M, dm_p, dh_p, do_p, x_isz, w_isz, o_isz, budget, tm_force=None):
    """Pick (tm, th).  Priority: largest hidden tile (th == dh_p means fully
    VMEM-resident weights, single reduction step, weights DMA'd once for the
    whole grid), then the largest token tile; tm drops below 128 only as a
    last resort."""
    n128 = dh_p // 128
    th_cands = sorted({d * 128 for d in range(1, n128 + 1) if n128 % d == 0},
                      reverse=True)

    if tm_force is not None:
        tm_cands = [_round_up(max(8, min(tm_force, _round_up(M, 8))), 8)]
        tm_floor = tm_cands[0]
    else:
        # Bigger default token tile where VMEM is plentiful (v5e/v6e: 128 MiB).
        tm_target = 512 if budget >= (80 << 20) else 256
        tm0 = min(tm_target, _round_up(M, 8))
        tm_cands = [t for t in dict.fromkeys((tm0, 256, 128, 64, 32, 16, 8)) if t <= tm0]
        tm_floor = min(128, tm0)

    tm_major = [t for t in tm_cands if t >= tm_floor]
    tm_minor = [t for t in tm_cands if t < tm_floor]

    for tms in (tm_major, tm_minor):
        for th in th_cands:
            for tm in tms:
                if _vmem_footprint(tm, th, dm_p, do_p, x_isz, w_isz, o_isz) <= budget:
                    return tm, th
    # TODO(synk): for extreme d_model the untiled (tm, dm_p) x block alone can exceed
    # VMEM; that regime would need an additional d_model reduction axis.
    return tm_cands[-1], th_cands[-1]


def prepare_mlp_weights(w_l, w_r, w_p, compute_dtype=None):
    """One-time (parameter-load-time) transform: transpose to [d_in, d_out]
    layouts, zero-pad to lane-dense (multiple-of-128) shapes, optionally cast
    to a bf16 compute dtype for the MXU-native path.  Do NOT call per forward."""
    d_hidden, d_model = w_l.shape
    d_out = w_p.shape[0]
    dm_p = _round_up(d_model, 128)
    dh_p = _round_up(d_hidden, 128)
    do_p = _round_up(d_out, 128)
    dt = compute_dtype if compute_dtype is not None else w_l.dtype
    wl_t = jnp.zeros((dm_p, dh_p), dt).at[:d_model, :d_hidden].set(w_l.T.astype(dt))
    wr_t = jnp.zeros((dm_p, dh_p), dt).at[:d_model, :d_hidden].set(w_r.T.astype(dt))
    wp_t = jnp.zeros((dh_p, do_p), dt).at[:d_hidden, :d_out].set(w_p.T.astype(dt))
    return wl_t, wr_t, wp_t


def mlp_kernel(x_ref, wl_ref, wr_ref, wp_ref, o_ref, acc_ref):
    k = pl.program_id(1)

    @pl.when(k == 0)
    def _init():
        acc_ref[...] = jnp.zeros_like(acc_ref)

    wl = wl_ref[...]
    wr = wr_ref[...]
    wp = wp_ref[...]
    # bf16 MXU path when weights were prepared in bf16; no-op cast for f32.
    x = x_ref[...].astype(wl.dtype)                                # [tm, dm_p]
    left = jnp.dot(x, wl, preferred_element_type=jnp.float32)      # [tm, th]
    right = jnp.dot(x, wr, preferred_element_type=jnp.float32)     # [tm, th]
    h = (left * right).astype(wl.dtype)                            # f32 gate on VPU (v5e-safe)
    acc_ref[...] += jnp.dot(h, wp, preferred_element_type=jnp.float32)  # [tm, do_p]

    @pl.when(k == pl.num_programs(1) - 1)
    def _finalize():
        o_ref[...] = acc_ref[...].astype(o_ref.dtype)


def mlp_pallas(x, wl_t, wr_t, wp_t, d_out, *, tm=None):
    """x: [..., d_model]; wl_t/wr_t: [dm_p, dh_p]; wp_t: [dh_p, do_p] (prepared)."""
    d_model = x.shape[-1]
    dm_p, dh_p = wl_t.shape
    do_p = wp_t.shape[1]

    lead = x.shape[:-1]
    M = 1
    for s in lead:
        M *= s
    x2 = x.reshape(M, d_model)

    x_isz = jnp.dtype(x.dtype).itemsize
    w_isz = jnp.dtype(wl_t.dtype).itemsize
    o_isz = x_isz

    # Per-generation VMEM budget (~0.85 * physical: ~54 MiB on v7x, ~109 MiB on v5e/v6e).
    budget = int(_vmem_capacity_bytes() * 0.85)

    tm_sel, th = _select_tiles(M, dm_p, dh_p, do_p, x_isz, w_isz, o_isz, budget,
                               tm_force=tm)
    k_steps = dh_p // th

    if tm is None and k_steps == 1 and M > 8:
        # Weights are VMEM-resident (constant block index -> no re-DMA), so splitting
        # the token axis is free; guarantee >= 2 tiles for v7x's second TensorCore.
        tm_sel = min(tm_sel, _round_up((M + 1) // 2, 8))
    tm = tm_sel

    m_p = _round_up(M, tm)
    grid = (m_p // tm, k_steps)

    # Zero-pad tokens/features: padded entries contribute nothing and are sliced off.
    if m_p != M or dm_p != d_model:
        x2 = jnp.zeros((m_p, dm_p), x2.dtype).at[:M, :d_model].set(x2)

    footprint = _vmem_footprint(tm, th, dm_p, do_p, x_isz, w_isz, o_isz)
    # Honest limit: footprint + fixed headroom for compiler-internal scratch,
    # capped at the per-generation ceiling (no 2x hedge).
    vmem_limit = int(min(budget, max(footprint + (8 << 20), 32 << 20)))

    n_i = m_p // tm
    w_bytes = (wl_t.size + wr_t.size + wp_t.size) * w_isz
    w_streams = 1 if k_steps == 1 else n_i   # weights re-streamed per token tile iff k > 1
    cost = pl.CostEstimate(
        flops=2 * m_p * (2 * dm_p * dh_p + dh_p * do_p),
        transcendentals=0,
        bytes_accessed=int(m_p * dm_p * x_isz + w_streams * w_bytes + m_p * do_p * o_isz),
    )

    y2 = pl.pallas_call(
        mlp_kernel,
        out_shape=jax.ShapeDtypeStruct((m_p, do_p), x.dtype),
        grid_spec=pltpu.PrefetchScalarGridSpec(
            num_scalar_prefetch=0,
            grid=grid,
            in_specs=[
                pl.BlockSpec((tm, dm_p), lambda i, k: (i, 0)),   # x (constant over k)
                pl.BlockSpec((dm_p, th), lambda i, k: (0, k)),   # W_l^T hidden tile
                pl.BlockSpec((dm_p, th), lambda i, k: (0, k)),   # W_r^T hidden tile
                pl.BlockSpec((th, do_p), lambda i, k: (k, 0)),   # W_p^T hidden tile
            ],
            out_specs=pl.BlockSpec((tm, do_p), lambda i, k: (i, 0)),
            scratch_shapes=[pltpu.VMEM((tm, do_p), jnp.float32)],
        ),
        compiler_params=pltpu.CompilerParams(
            dimension_semantics=("parallel", "arbitrary"),
            vmem_limit_bytes=vmem_limit,
        ),
        cost_estimate=cost,
    )(x2, wl_t, wr_t, wp_t)

    return y2[:M, :d_out].reshape(*lead, d_out)


def mlp_ref(x, w_l, w_r, w_p):
    left = jnp.einsum("...d,hd->...h", x, w_l)
    right = jnp.einsum("...d,hd->...h", x, w_r)
    return jnp.einsum("...h,oh->...o", left * right, w_p)


if __name__ == "__main__":
    # Small shapes consistent with the module: batch=2, seq=8, d_model=32,
    # d_hidden=64, d_out=d_model (MLP default d_out=d_model).
    d_model, d_hidden = 32, 64
    d_out = d_model
    batch, seq = 2, 8

    key = jax.random.PRNGKey(0)
    kx, kw, kp = jax.random.split(key, 3)

    x = jax.random.normal(kx, (batch, seq, d_model), dtype=jnp.float32)

    # Deterministic parameter init (matches nn.Linear's kaiming-uniform scale).
    bound_w = 1.0 / (d_model ** 0.5)
    bound_p = 1.0 / (d_hidden ** 0.5)
    # Bilinear layer weight: [2*d_hidden, d_model], chunked into w_l / w_r.
    w_full = jax.random.uniform(kw, (2 * d_hidden, d_model),
                                minval=-bound_w, maxval=bound_w, dtype=jnp.float32)
    w_l, w_r = w_full[:d_hidden], w_full[d_hidden:]
    # Projection weight: [d_out, d_hidden].
    w_p = jax.random.uniform(kp, (d_out, d_hidden),
                             minval=-bound_p, maxval=bound_p, dtype=jnp.float32)

    y_ref = mlp_ref(x, w_l, w_r, w_p)

    # f32 path (exactly matches the PyTorch module's default dtype).
    wl_t, wr_t, wp_t = prepare_mlp_weights(w_l, w_r, w_p)
    y = jax.block_until_ready(mlp_pallas(x, wl_t, wr_t, wp_t, d_out))
    assert y.shape == (batch, seq, d_out)
    assert jnp.allclose(y, y_ref, atol=1e-4, rtol=1e-5), "f32 mismatch vs reference"

    # Optional bf16-weight MXU fast path (f32 accumulation kept); looser tolerance.
    wl_b, wr_b, wp_b = prepare_mlp_weights(w_l, w_r, w_p, compute_dtype=jnp.bfloat16)
    y_b = jax.block_until_ready(mlp_pallas(x, wl_b, wr_b, wp_b, d_out))
    assert y_b.shape == (batch, seq, d_out)
    assert jnp.allclose(y_b, y_ref, atol=1e-1, rtol=1e-1), "bf16 path mismatch vs reference"

    print("KERNEL_OK")
</pallas_src>

<mosaic_0001>
module attributes {stable_mosaic.version = 11 : i64} {
  func.func @mlp_kernel(%arg0: i32, %arg1: i32, %arg2: memref<8x128xf32, #tpu.memory_space<vmem>>, %arg3: memref<128x128xf32, #tpu.memory_space<vmem>>, %arg4: memref<128x128xf32, #tpu.memory_space<vmem>>, %arg5: memref<128x128xf32, #tpu.memory_space<vmem>>, %arg6: memref<8x128xf32, #tpu.memory_space<vmem>>, %arg7: memref<8x128xf32, #tpu.memory_space<vmem>>) attributes {dimension_semantics = [#tpu.dimension_semantics<parallel>, #tpu.dimension_semantics<arbitrary>], iteration_bounds = array<i64: 2, 1>, scalar_prefetch = 0 : i64, scratch_operands = 1 : i64, tpu.core_type = #tpu.core_type<tc>, window_params = [{transform_indices = @transform_0, window_bounds = array<i64: 8, 128>}, {transform_indices = @transform_1, window_bounds = array<i64: 128, 128>}, {transform_indices = @transform_2, window_bounds = array<i64: 128, 128>}, {transform_indices = @transform_3, window_bounds = array<i64: 128, 128>}, {transform_indices = @transform_4, window_bounds = array<i64: 8, 128>}]} {
    %c0_i32 = arith.constant 0 : i32
    %0 = arith.cmpi eq, %arg1, %c0_i32 : i32
    %1 = arith.extui %0 : i1 to i32
    %c0_i32_0 = arith.constant 0 : i32
    %2 = arith.cmpi ne, %1, %c0_i32_0 : i32
    scf.if %2 {
      %cst_16 = arith.constant 0.000000e+00 : f32
      %17 = vector.broadcast %cst_16 : f32 to vector<8x128xf32>
      %c0_17 = arith.constant 0 : index
      %c0_18 = arith.constant 0 : index
      %18 = vector.load %arg7[%c0_17, %c0_18] : memref<8x128xf32, #tpu.memory_space<vmem>>, vector<8x128xf32>
      tpu.vector_store %arg7[%c0_17, %c0_18], %17 {strides = array<i32>} : memref<8x128xf32, #tpu.memory_space<vmem>>, vector<8x128xf32>,
    } else {
    }
    %c0 = arith.constant 0 : index
    %c0_1 = arith.constant 0 : index
    %3 = vector.load %arg3[%c0, %c0_1] : memref<128x128xf32, #tpu.memory_space<vmem>>, vector<128x128xf32>
    %c0_2 = arith.constant 0 : index
    %c0_3 = arith.constant 0 : index
    %4 = vector.load %arg4[%c0_2, %c0_3] : memref<128x128xf32, #tpu.memory_space<vmem>>, vector<128x128xf32>
    %c0_4 = arith.constant 0 : index
    %c0_5 = arith.constant 0 : index
    %5 = vector.load %arg5[%c0_4, %c0_5] : memref<128x128xf32, #tpu.memory_space<vmem>>, vector<128x128xf32>
    %c0_6 = arith.constant 0 : index
    %c0_7 = arith.constant 0 : index
    %6 = vector.load %arg2[%c0_6, %c0_7] : memref<8x128xf32, #tpu.memory_space<vmem>>, vector<8x128xf32>
    %cst = arith.constant dense<0.000000e+00> : vector<8x128xf32>
    %7 = tpu.matmul %6, %3, %cst {dimension_numbers = #tpu.dot_dimension_numbers<[1], [0], [0], [1], [0, 0, 1, 1], [], []>} : vector<8x128xf32>, vector<128x128xf32>, vector<8x128xf32> -> vector<8x128xf32>
    %cst_8 = arith.constant dense<0.000000e+00> : vector<8x128xf32>
    %8 = tpu.matmul %6, %4, %cst_8 {dimension_numbers = #tpu.dot_dimension_numbers<[1], [0], [0], [1], [0, 0, 1, 1], [], []>} : vector<8x128xf32>, vector<128x128xf32>, vector<8x128xf32> -> vector<8x128xf32>
    %9 = arith.mulf %7, %8 : vector<8x128xf32>
    %c0_9 = arith.constant 0 : index
    %c0_10 = arith.constant 0 : index
    %10 = vector.load %arg7[%c0_9, %c0_10] : memref<8x128xf32, #tpu.memory_space<vmem>>, vector<8x128xf32>
    %cst_11 = arith.constant dense<0.000000e+00> : vector<8x128xf32>
    %11 = tpu.matmul %9, %5, %cst_11 {dimension_numbers = #tpu.dot_dimension_numbers<[1], [0], [0], [1], [0, 0, 1, 1], [], []>} : vector<8x128xf32>, vector<128x128xf32>, vector<8x128xf32> -> vector<8x128xf32>
    %12 = arith.addf %10, %11 : vector<8x128xf32>
    %c0_12 = arith.constant 0 : index
    %c0_13 = arith.constant 0 : index
    %13 = vector.load %arg7[%c0_12, %c0_13] : memref<8x128xf32, #tpu.memory_space<vmem>>, vector<8x128xf32>
    tpu.vector_store %arg7[%c0_12, %c0_13], %12 {strides = array<i32>} : memref<8x128xf32, #tpu.memory_space<vmem>>, vector<8x128xf32>,
    %c0_i32_14 = arith.constant 0 : i32
    %14 = arith.cmpi eq, %arg1, %c0_i32_14 : i32
    %15 = arith.extui %14 : i1 to i32
    %c0_i32_15 = arith.constant 0 : i32
    %16 = arith.cmpi ne, %15, %c0_i32_15 : i32
    scf.if %16 {
      %c0_16 = arith.constant 0 : index
      %c0_17 = arith.constant 0 : index
      %17 = vector.load %arg7[%c0_16, %c0_17] : memref<8x128xf32, #tpu.memory_space<vmem>>, vector<8x128xf32>
      %c0_18 = arith.constant 0 : index
      %c0_19 = arith.constant 0 : index
      %18 = vector.load %arg6[%c0_18, %c0_19] : memref<8x128xf32, #tpu.memory_space<vmem>>, vector<8x128xf32>
      tpu.vector_store %arg6[%c0_18, %c0_19], %17 {strides = array<i32>} : memref<8x128xf32, #tpu.memory_space<vmem>>, vector<8x128xf32>,
    } else {
    }
    return
  }
  func.func @transform_0(%arg0: i32, %arg1: i32) -> (i32, i32) {
    %c0_i32 = arith.constant 0 : i32
    %c0_i32_0 = arith.constant 0 : i32
    return %arg0, %c0_i32 : i32, i32
  }
  func.func @transform_1(%arg0: i32, %arg1: i32) -> (i32, i32) {
    %c0_i32 = arith.constant 0 : i32
    %c0_i32_0 = arith.constant 0 : i32
    return %c0_i32, %arg1 : i32, i32
  }
  func.func @transform_2(%arg0: i32, %arg1: i32) -> (i32, i32) {
    %c0_i32 = arith.constant 0 : i32
    %c0_i32_0 = arith.constant 0 : i32
    return %c0_i32, %arg1 : i32, i32
  }
  func.func @transform_3(%arg0: i32, %arg1: i32) -> (i32, i32) {
    %c0_i32 = arith.constant 0 : i32
    %c0_i32_0 = arith.constant 0 : i32
    return %arg1, %c0_i32 : i32, i32
  }
  func.func @transform_4(%arg0: i32, %arg1: i32) -> (i32, i32) {
    %c0_i32 = arith.constant 0 : i32
    %c0_i32_0 = arith.constant 0 : i32
    return %arg0, %c0_i32 : i32, i32
  }
}

</mosaic_0001>

<llo_original>
// kernel: tpu_custom_call.1
$region0: #{tpu_custom_call.1}
  #allocation0 [shape = 'u32[]', space=smem, size = 0x4, offset = 0x4, fixed_abs, tag = 'smem constant byte address 0x4 - core index']
  #allocation1 [shape = 'u32[72,128]{1,0:T(1,128)}', space=vmem, size = 0x9000, scoped, tag = 'internal scratch']
  #allocation2 [shape = 'f32[8,128]{1,0:T(8,128)}', space=vmem, size = 0x1000, scoped, tag = 'scratch operand']
  %s0 = inlined_call_operand.hbm [shape: f32[16,128], index: 0, kind: input, shape index: {}]
  %s1 = inlined_call_operand.hbm [shape: f32[128,128], index: 1, kind: input, shape index: {}]
  %s2 = inlined_call_operand.hbm [shape: f32[128,128], index: 2, kind: input, shape index: {}]
  %s3 = inlined_call_operand.hbm [shape: f32[128,128], index: 3, kind: input, shape index: {}]
  %s4 = inlined_call_operand.hbm [shape: f32[16,128], index: 4, kind: output, shape index: {}]
  %s5 = sld [smem:[#allocation0]]
  $region73: #{tpu_custom_call.1} parent=0
    _
  %s7 = ssub.s32 1, %s5
  %s8 = scalar_select 0, %s7, %s5
  $region1: #{tpu_custom_call.1} parent=0
    #allocation3 [shape = 'u8[8192]{0}', space=vmem, size = 0x2000, scoped, tag = 'input window, operand 0']
    #allocation4 [shape = 's32[2]{0}', space=sflag, size = 0x8, scoped, tag = 'scoped memory for tpu_custom_call.1']
    #allocation5 [shape = 's32[2]{0}', space=sflag, size = 0x8, scoped, tag = 'scoped memory for tpu_custom_call.1']
    #allocation6 [shape = 'u8[65536]{0}', space=vmem, size = 0x10000, scoped, tag = 'input window, operand 1, single buffered']
    #allocation7 [shape = 's32[1]{0}', space=sflag, size = 0x4, scoped, tag = 'scoped memory for tpu_custom_call.1']
    #allocation8 [shape = 'u8[65536]{0}', space=vmem, size = 0x10000, scoped, tag = 'input window, operand 2, single buffered']
    #allocation9 [shape = 'u8[65536]{0}', space=vmem, size = 0x10000, scoped, tag = 'input window, operand 3, single buffered']
    #allocation10 [shape = 's32[1]{0}', space=sflag, size = 0x4, scoped, tag = 'scoped memory for tpu_custom_call.1']
    #allocation11 [shape = 'u8[8192]{0}', space=vmem, size = 0x2000, scoped, tag = 'output window, operand 0']
    %9 = vsyncpa [#allocation4], 0
    %s10 = scalar_lea.sflag [#allocation4], 1
    %11 = vsyncpa %s10, 0
    %12 = vsyncpa [#allocation7], 0
    %13 = vsyncpa [#allocation10], 0
    %14 = vsyncpa [#allocation5], 0
    %s15 = scalar_lea.sflag [#allocation5], 1
    %16 = vsyncpa %s15, 0
    loop: start=0, step=1, limit=4
    $region2: #{tpu_custom_call.1} parent=1 // loop_pre_header
      _
    $region3: #{tpu_custom_call.1} parent=1 // loop_header
      %s18 = sphi 0, %s22
      %p19 = scmp.ge.s32.totalorder %s18, 4
      %s25 = sphi 0, %s37
      %s26 = sphi 0, %s33
      %s27 = sphi 0, %s25
      %s28 = sphi 0, %s26
      %s29 = sphi 0, %s27
      %s30 = sphi 0, %s28
      %s40 = sphi 0, %s42
      %s43 = sphi 0, %s40
      %s44 = sphi 0, %s43
      %s60 = sphi 0, %s44
      %s66 = sphi 0, %s68
      %s69 = sphi 0, %s66
      %s70 = sphi 0, %s69
      %s86 = sphi 0, %s70
      %s92 = sphi 0, %s94
      %s95 = sphi 0, %s92
      %s96 = sphi 0, %s95
      %s112 = sphi 0, %s96
      %s118 = sphi 0, %s120
      %s121 = sphi 0, %s118
      %s122 = sphi 0, %s121
      %s138 = sphi 0, %s122
      %s144 = sphi 0, %s146
      %s147 = sphi 0, %s144
      %s148 = sphi 0, %s147
      %s164 = sphi 0, %s148
    $region4: #{tpu_custom_call.1} parent=1 // loop_header_branch
      %21 = sbr.rel (%p19) target = $region8
    $region5: #{tpu_custom_call.1} parent=1 // loop_body
      %s23 = ssub.s32 %s18, 1
      %s24 = ssub.s32 %s18, 2
      %s31 = sadd.s32 1, %s26
      %p32 = scmp.ge.s32.totalorder %s31, 1
      %s33 = scalar_select %p32, 0, %s31
      %s34 = sadd.s32 1, %s25
      %s35 = scalar_select %p32, %s34, %s25
      %p36 = scmp.ge.s32.totalorder %s35, 2
      %s37 = scalar_select %p36, 0, %s35
      %s38 = ssub.s32 %s25, %s37
      %p39 = scmp.eq.s32.totalorder %s38, 0
      %s41 = sadd.s32 %s40, 1
      %s42 = scalar_select %p39, %s40, %s41
      %p45 = pneg %p39
      %p46 = scmp.eq.s32.totalorder %s18, 1
      %p47 = por %p45, %p46
      %p48 = scmp.ne.s32.totalorder %s40, %s43
      %p49 = scmp.eq.s32.totalorder %s18, 0
      %p50 = por %p48, %p49
      %p51 = scmp.ne.s32.totalorder %s40, %s43
      %p52 = scmp.eq.s32.totalorder %s23, 1
      %p53 = por %p51, %p52
      %p54 = scmp.ne.s32.totalorder %s43, %s44
      %p55 = scmp.eq.s32.totalorder %s23, 0
      %p56 = por %p54, %p55
      %p57 = scmp.ne.s32.totalorder %s43, %s44
      %p58 = scmp.eq.s32.totalorder %s24, 1
      %p59 = por %p57, %p58
      %p61 = scmp.ne.s32.totalorder %s44, %s60
      %p62 = scmp.eq.s32.totalorder %s24, 0
      %p63 = por %p61, %p62
      %s64 = ssub.s32 %s26, %s33
      %p65 = scmp.eq.s32.totalorder %s64, 0
      %s67 = sadd.s32 %s66, 1
      %s68 = scalar_select %p65, %s66, %s67
      %p71 = pneg %p65
      %p72 = scmp.eq.s32.totalorder %s18, 1
      %p73 = por %p71, %p72
      %p74 = scmp.ne.s32.totalorder %s66, %s69
      %p75 = scmp.eq.s32.totalorder %s18, 0
      %p76 = por %p74, %p75
      %p77 = scmp.ne.s32.totalorder %s66, %s69
      %p78 = scmp.eq.s32.totalorder %s23, 1
      %p79 = por %p77, %p78
      %p80 = scmp.ne.s32.totalorder %s69, %s70
      %p81 = scmp.eq.s32.totalorder %s23, 0
      %p82 = por %p80, %p81
      %p83 = scmp.ne.s32.totalorder %s69, %s70
      %p84 = scmp.eq.s32.totalorder %s24, 1
      %p85 = por %p83, %p84
      %p87 = scmp.ne.s32.totalorder %s70, %s86
      %p88 = scmp.eq.s32.totalorder %s24, 0
      %p89 = por %p87, %p88
      %s90 = ssub.s32 %s26, %s33
      %p91 = scmp.eq.s32.totalorder %s90, 0
      %s93 = sadd.s32 %s92, 1
      %s94 = scalar_select %p91, %s92, %s93
      %p97 = pneg %p91
      %p98 = scmp.eq.s32.totalorder %s18, 1
      %p99 = por %p97, %p98
      %p100 = scmp.ne.s32.totalorder %s92, %s95
      %p101 = scmp.eq.s32.totalorder %s18, 0
      %p102 = por %p100, %p101
      %p103 = scmp.ne.s32.totalorder %s92, %s95
      %p104 = scmp.eq.s32.totalorder %s23, 1
      %p105 = por %p103, %p104
      %p106 = scmp.ne.s32.totalorder %s95, %s96
      %p107 = scmp.eq.s32.totalorder %s23, 0
      %p108 = por %p106, %p107
      %p109 = scmp.ne.s32.totalorder %s95, %s96
      %p110 = scmp.eq.s32.totalorder %s24, 1
      %p111 = por %p109, %p110
      %p113 = scmp.ne.s32.totalorder %s96, %s112
      %p114 = scmp.eq.s32.totalorder %s24, 0
      %p115 = por %p113, %p114
      %s116 = ssub.s32 %s26, %s33
      %p117 = scmp.eq.s32.totalorder %s116, 0
      %s119 = sadd.s32 %s118, 1
      %s120 = scalar_select %p117, %s118, %s119
      %p123 = pneg %p117
      %p124 = scmp.eq.s32.totalorder %s18, 1
      %p125 = por %p123, %p124
      %p126 = scmp.ne.s32.totalorder %s118, %s121
      %p127 = scmp.eq.s32.totalorder %s18, 0
      %p128 = por %p126, %p127
      %p129 = scmp.ne.s32.totalorder %s118, %s121
      %p130 = scmp.eq.s32.totalorder %s23, 1
      %p131 = por %p129, %p130
      %p132 = scmp.ne.s32.totalorder %s121, %s122
      %p133 = scmp.eq.s32.totalorder %s23, 0
      %p134 = por %p132, %p133
      %p135 = scmp.ne.s32.totalorder %s121, %s122
      %p136 = scmp.eq.s32.totalorder %s24, 1
      %p137 = por %p135, %p136
      %p139 = scmp.ne.s32.totalorder %s122, %s138
      %p140 = scmp.eq.s32.totalorder %s24, 0
      %p141 = por %p139, %p140
      %s142 = ssub.s32 %s25, %s37
      %p143 = scmp.eq.s32.totalorder %s142, 0
      %s145 = sadd.s32 %s144, 1
      %s146 = scalar_select %p143, %s144, %s145
      %p149 = pneg %p143
      %p150 = scmp.eq.s32.totalorder %s18, 1
      %p151 = por %p149, %p150
      %p152 = scmp.ne.s32.totalorder %s144, %s147
      %p153 = scmp.eq.s32.totalorder %s18, 0
      %p154 = por %p152, %p153
      %p155 = scmp.ne.s32.totalorder %s144, %s147
      %p156 = scmp.eq.s32.totalorder %s23, 1
      %p157 = por %p155, %p156
      %p158 = scmp.ne.s32.totalorder %s147, %s148
      %p159 = scmp.eq.s32.totalorder %s23, 0
      %p160 = por %p158, %p159
      %p161 = scmp.ne.s32.totalorder %s147, %s148
      %p162 = scmp.eq.s32.totalorder %s24, 1
      %p163 = por %p161, %p162
      %p165 = scmp.ne.s32.totalorder %s148, %s164
      %p166 = scmp.eq.s32.totalorder %s24, 0
      %p167 = por %p165, %p166
      %p168 = scmp.le.s32.totalorder 1, %s18
      %p169 = scmp.lt.s32.totalorder %s18, 3
      %p170 = pnand %p168, %p169
      %p171 = pneg %p170
      // Predicated region
      $region9: #{tpu_custom_call.1} parent=5 // pred_check
        _
      $region10: #{tpu_custom_call.1} parent=5 // pred_check_branch
        %173 = sbr.rel (%p170) target = $region12
      $region11: #{tpu_custom_call.1} parent=5 // pred_region
        %s174 = ssub.s32 %s18, 1
        // Predicated region
        $region13: #{tpu_custom_call.1} parent=11 // pred_check
          %p175 = pneg %p82
        $region14: #{tpu_custom_call.1} parent=11 // pred_check_branch
          %177 = sbr.rel (%p175) target = $region16
        $region15: #{tpu_custom_call.1} parent=11 // pred_region
          %179 = vsyncadd [#allocation7], 0
          %s180 = smul.addr %s28, 8
          %s181 = scalar_lea.hbm %s1, %s180
          %s182 = sshll.u32 %s181, 4
          %s183 = int_to_ptr.hbm [resolvable:$true] %s182
          %s184 = sshll.u32 [#allocation6], 4
          %s185 = int_to_ptr.vmem [resolvable:$true] %s184
          %190 = dma.hbm_to_vmem [thread:$0]  %s183, 2048, %s185, [#allocation7], 128, 128, 8
        $region16: #{tpu_custom_call.1} parent=11 // pred_fallthru
          _
        // Predicated region
        $region17: #{tpu_custom_call.1} parent=11 // pred_check
          %p191 = pneg %p108
        $region18: #{tpu_custom_call.1} parent=11 // pred_check_branch
          %193 = sbr.rel (%p191) target = $region20
        $region19: #{tpu_custom_call.1} parent=11 // pred_region
          %195 = vsyncadd [#allocation7], 0
          %s196 = smul.addr %s28, 8
          %s197 = scalar_lea.hbm %s2, %s196
          %s198 = sshll.u32 %s197, 4
          %s199 = int_to_ptr.hbm [resolvable:$true] %s198
          %s200 = sshll.u32 [#allocation8], 4
          %s201 = int_to_ptr.vmem [resolvable:$true] %s200
          %206 = dma.hbm_to_vmem [thread:$0]  %s199, 2048, %s201, [#allocation7], 128, 128, 8
        $region20: #{tpu_custom_call.1} parent=11 // pred_fallthru
          _
        // Predicated region
        $region21: #{tpu_custom_call.1} parent=11 // pred_check
          %p207 = pneg %p134
        $region22: #{tpu_custom_call.1} parent=11 // pred_check_branch
          %209 = sbr.rel (%p207) target = $region24
        $region23: #{tpu_custom_call.1} parent=11 // pred_region
          %s210 = smul.u32 16, %s28
          %212 = vsyncadd [#allocation10], 0
          %s213 = smul.addr %s210, 8
          %s214 = scalar_lea.hbm %s3, %s213
          %s215 = sshll.u32 %s214, 4
          %s216 = int_to_ptr.hbm [resolvable:$true] %s215
          %s217 = sshll.u32 [#allocation9], 4
          %s218 = int_to_ptr.vmem [resolvable:$true] %s217
          %223 = dma.hbm_to_vmem [thread:$0]  %s216, 2048, %s218, [#allocation10], 128, 128, 8
        $region24: #{tpu_custom_call.1} parent=11 // pred_fallthru
          _
      $region12: #{tpu_custom_call.1} parent=5 // pred_fallthru
        _
      %p224 = scmp.lt.s32.totalorder %s18, 2
      // Predicated region
      $region25: #{tpu_custom_call.1} parent=5 // pred_check
        %p225 = pneg %p224
      $region26: #{tpu_custom_call.1} parent=5 // pred_check_branch
        %227 = sbr.rel (%p225) target = $region28
      $region27: #{tpu_custom_call.1} parent=5 // pred_region
        // Predicated region
        $region29: #{tpu_custom_call.1} parent=27 // pred_check
          %p228 = pneg %p50
        $region30: #{tpu_custom_call.1} parent=27 // pred_check_branch
          %230 = sbr.rel (%p228) target = $region32
        $region31: #{tpu_custom_call.1} parent=27 // pred_region
          %s231 = sand.u32 %s40, 1
          %s232 = scalar_lea.sflag [#allocation4], %s231
          %s233 = sand.u32 %s40, 1
          %s234 = smul.addr %s233, 8
          %s235 = scalar_lea.vmem [#allocation3], %s234
          %237 = vsyncadd %s232, 0
          %s238 = smul.addr %s25, 8
          %s239 = scalar_lea.hbm %s0, %s238
          %s241 = sshll.u32 %s239, 4
          %s242 = int_to_ptr.hbm [resolvable:$true] %s241
          %s243 = sshll.u32 %s235, 4
          %s244 = int_to_ptr.vmem [resolvable:$true] %s243
          %246 = dma.hbm_to_vmem [thread:$0]  %s242, 128, %s244, %s232
        $region32: #{tpu_custom_call.1} parent=27 // pred_fallthru
          _
      $region28: #{tpu_custom_call.1} parent=5 // pred_fallthru
        _
      %p247 = scmp.le.s32.totalorder 1, %s18
      %p248 = scmp.lt.s32.totalorder %s18, 3
      %p249 = pnand %p247, %p248
      %p250 = pneg %p249
      // Predicated region
      $region33: #{tpu_custom_call.1} parent=5 // pred_check
        _
      $region34: #{tpu_custom_call.1} parent=5 // pred_check_branch
        %252 = sbr.rel (%p249) target = $region36
      $region35: #{tpu_custom_call.1} parent=5 // pred_region
        %s253 = ssub.s32 %s18, 1
        %s254 = sand.u32 %s43, 1
        %s255 = scalar_lea.sflag [#allocation4], %s254
        %s256 = sand.u32 %s43, 1
        %s257 = smul.addr %s256, 8
        %s258 = scalar_lea.vmem [#allocation3], %s257
        // Predicated region
        $region37: #{tpu_custom_call.1} parent=35 // pred_check
          %p259 = pneg %p56
        $region38: #{tpu_custom_call.1} parent=35 // pred_check_branch
          %261 = sbr.rel (%p259) target = $region40
        $region39: #{tpu_custom_call.1} parent=35 // pred_region
          %263 = dma.done %s255, 128
        $region40: #{tpu_custom_call.1} parent=35 // pred_fallthru
          _
        // Predicated region
        $region41: #{tpu_custom_call.1} parent=35 // pred_check
          %p264 = pneg %p82
        $region42: #{tpu_custom_call.1} parent=35 // pred_check_branch
          %266 = sbr.rel (%p264) target = $region44
        $region43: #{tpu_custom_call.1} parent=35 // pred_region
          %268 = dma.done [#allocation7], 2048
        $region44: #{tpu_custom_call.1} parent=35 // pred_fallthru
          _
        // Predicated region
        $region45: #{tpu_custom_call.1} parent=35 // pred_check
          %p269 = pneg %p108
        $region46: #{tpu_custom_call.1} parent=35 // pred_check_branch
          %271 = sbr.rel (%p269) target = $region48
        $region47: #{tpu_custom_call.1} parent=35 // pred_region
          %273 = dma.done [#allocation7], 2048
        $region48: #{tpu_custom_call.1} parent=35 // pred_fallthru
          _
        // Predicated region
        $region49: #{tpu_custom_call.1} parent=35 // pred_check
          %p274 = pneg %p134
        $region50: #{tpu_custom_call.1} parent=35 // pred_check_branch
          %276 = sbr.rel (%p274) target = $region52
        $region51: #{tpu_custom_call.1} parent=35 // pred_region
          %278 = dma.done [#allocation10], 2048
        $region52: #{tpu_custom_call.1} parent=35 // pred_fallthru
          _
        %s279 = sand.u32 %s43, 1
        %s280 = scalar_lea.sflag [#allocation4], %s279
        %s281 = sand.u32 %s43, 1
        %s282 = smul.addr %s281, 8
        %s283 = scalar_lea.vmem [#allocation3], %s282
        %p284 = pneg %p56
        %p285 = pneg %p53
        %p286 = pneg %p82
        %p287 = pneg %p79
        %p288 = pneg %p108
        %p289 = pneg %p105
        %p290 = pneg %p134
        %p291 = pneg %p131
        %p292 = pneg %p160
        %p293 = pneg %p157
        %s294 = sand.u32 %s147, 1
        %s295 = scalar_lea.sflag [#allocation5], %s294
        %s296 = sand.u32 %s147, 1
        %s297 = smul.addr %s296, 8
        %s298 = scalar_lea.vmem [#allocation11], %s297
        %s299 = smul.u32 16, %s28
        %p300 = scmp.eq.s32.totalorder %s28, 0
        // Predicated region
        $region53: #{tpu_custom_call.1} parent=35 // pred_check
          %p301 = pneg %p300
        $region54: #{tpu_custom_call.1} parent=35 // pred_check_branch
          %303 = sbr.rel (%p301) target = $region56
        $region55: #{tpu_custom_call.1} parent=35 // pred_region
          %304 = vst [vmem:[#allocation2] sm:$0xff] 0.0
        $region56: #{tpu_custom_call.1} parent=35 // pred_fallthru
          _
        %v305 = vld [vmem:[#allocation6] sm:$0xff]
        %v306 = vld [vmem:[#allocation6 + $0x8] sm:$0xff]
        %v307 = vld [vmem:[#allocation6 + $0x10] sm:$0xff]
        %v308 = vld [vmem:[#allocation6 + $0x18] sm:$0xff]
        %v309 = vld [vmem:[#allocation6 + $0x20] sm:$0xff]
        %v310 = vld [vmem:[#allocation6 + $0x28] sm:$0xff]
        %v311 = vld [vmem:[#allocation6 + $0x30] sm:$0xff]
        %v312 = vld [vmem:[#allocation6 + $0x38] sm:$0xff]
        %v313 = vld [vmem:[#allocation6 + $0x40] sm:$0xff]
        %v314 = vld [vmem:[#allocation6 + $0x48] sm:$0xff]
        %v315 = vld [vmem:[#allocation6 + $0x50] sm:$0xff]
        %v316 = vld [vmem:[#allocation6 + $0x58] sm:$0xff]
        %v317 = vld [vmem:[#allocation6 + $0x60] sm:$0xff]
        %v318 = vld [vmem:[#allocation6 + $0x68] sm:$0xff]
        %v319 = vld [vmem:[#allocation6 + $0x70] sm:$0xff]
        %v320 = vld [vmem:[#allocation6 + $0x78] sm:$0xff]
        %v321 = vld [vmem:[#allocation8] sm:$0xff]
        %v322 = vld [vmem:[#allocation8 + $0x8] sm:$0xff]
        %v323 = vld [vmem:[#allocation8 + $0x10] sm:$0xff]
        %v324 = vld [vmem:[#allocation8 + $0x18] sm:$0xff]
        %v325 = vld [vmem:[#allocation8 + $0x20] sm:$0xff]
        %v326 = vld [vmem:[#allocation8 + $0x28] sm:$0xff]
        %v327 = vld [vmem:[#allocation8 + $0x30] sm:$0xff]
        %v328 = vld [vmem:[#allocation8 + $0x38] sm:$0xff]
        %v329 = vld [vmem:[#allocation8 + $0x40] sm:$0xff]
        %v330 = vld [vmem:[#allocation8 + $0x48] sm:$0xff]
        %v331 = vld [vmem:[#allocation8 + $0x50] sm:$0xff]
        %v332 = vld [vmem:[#allocation8 + $0x58] sm:$0xff]
        %v333 = vld [vmem:[#allocation8 + $0x60] sm:$0xff]
        %v334 = vld [vmem:[#allocation8 + $0x68] sm:$0xff]
        %v335 = vld [vmem:[#allocation8 + $0x70] sm:$0xff]
        %v336 = vld [vmem:[#allocation8 + $0x78] sm:$0xff]
        %v337 = vld [vmem:[#allocation9] sm:$0xff]
        %v338 = vld [vmem:[#allocation9 + $0x8] sm:$0xff]
        %v339 = vld [vmem:[#allocation9 + $0x10] sm:$0xff]
        %v340 = vld [vmem:[#allocation9 + $0x18] sm:$0xff]
        %v341 = vld [vmem:[#allocation9 + $0x20] sm:$0xff]
        %v342 = vld [vmem:[#allocation9 + $0x28] sm:$0xff]
        %v343 = vld [vmem:[#allocation9 + $0x30] sm:$0xff]
        %v344 = vld [vmem:[#allocation9 + $0x38] sm:$0xff]
        %v345 = vld [vmem:[#allocation9 + $0x40] sm:$0xff]
        %v346 = vld [vmem:[#allocation9 + $0x48] sm:$0xff]
        %v347 = vld [vmem:[#allocation9 + $0x50] sm:$0xff]
        %v348 = vld [vmem:[#allocation9 + $0x58] sm:$0xff]
        %v349 = vld [vmem:[#allocation9 + $0x60] sm:$0xff]
        %v350 = vld [vmem:[#allocation9 + $0x68] sm:$0xff]
        %v351 = vld [vmem:[#allocation9 + $0x70] sm:$0xff]
        %v352 = vld [vmem:[#allocation9 + $0x78] sm:$0xff]
        %v353 = vld [vmem:[%s258] sm:$0xff]
        %354 = vmatpush.msra.mxu0 %v320
        %355 = vmatpush.msra.mxu0 %v319
        %356 = vmatpush.msra.mxu0 %v318
        %357 = vmatpush.msra.mxu0 %v317
        %358 = vmatpush.msra.mxu0 %v316
        %359 = vmatpush.msra.mxu0 %v315
        %360 = vmatpush.msra.mxu0 %v314
        %361 = vmatpush.msra.mxu0 %v313
        %362 = vmatpush.msra.mxu0 %v312
        %363 = vmatpush.msra.mxu0 %v311
        %364 = vmatpush.msra.mxu0 %v310
        %365 = vmatpush.msra.mxu0 %v309
        %366 = vmatpush.msra.mxu0 %v308
        %367 = vmatpush.msra.mxu0 %v307
        %368 = vmatpush.msra.mxu0 %v306
        %369 = vmatpush.msra.mxu0 %v305
        %370 = vmatmul.f32.gmra.mxu0 %v353
        %v371 = vpop.f32.mrf.mxu0
        %v372 = vadd.f32 0.0, %v371
        %373 = vdwg.mxu0
        %374 = vmatpush.msra.mxu0 %v336
        %375 = vmatpush.msra.mxu0 %v335
        %376 = vmatpush.msra.mxu0 %v334
        %377 = vmatpush.msra.mxu0 %v333
        %378 = vmatpush.msra.mxu0 %v332
        %379 = vmatpush.msra.mxu0 %v331
        %380 = vmatpush.msra.mxu0 %v330
        %381 = vmatpush.msra.mxu0 %v329
        %382 = vmatpush.msra.mxu0 %v328
        %383 = vmatpush.msra.mxu0 %v327
        %384 = vmatpush.msra.mxu0 %v326
        %385 = vmatpush.msra.mxu0 %v325
        %386 = vmatpush.msra.mxu0 %v324
        %387 = vmatpush.msra.mxu0 %v323
        %388 = vmatpush.msra.mxu0 %v322
        %389 = vmatpush.msra.mxu0 %v321
        %390 = vmatmul.f32.gmra.mxu0 %v353
        %v391 = vpop.f32.mrf.mxu0
        %v392 = vadd.f32 0.0, %v391
        %393 = vdwg.mxu0
        %v394 = vmul.f32 %v372, %v392
        %v395 = vld [vmem:[#allocation2] sm:$0xff]
        %396 = vmatpush.msra.mxu0 %v352
        %397 = vmatpush.msra.mxu0 %v351
        %398 = vmatpush.msra.mxu0 %v350
        %399 = vmatpush.msra.mxu0 %v349
        %400 = vmatpush.msra.mxu0 %v348
        %401 = vmatpush.msra.mxu0 %v347
        %402 = vmatpush.msra.mxu0 %v346
        %403 = vmatpush.msra.mxu0 %v345
        %404 = vmatpush.msra.mxu0 %v344
        %405 = vmatpush.msra.mxu0 %v343
        %406 = vmatpush.msra.mxu0 %v342
        %407 = vmatpush.msra.mxu0 %v341
        %408 = vmatpush.msra.mxu0 %v340
        %409 = vmatpush.msra.mxu0 %v339
        %410 = vmatpush.msra.mxu0 %v338
        %411 = vmatpush.msra.mxu0 %v337
        %412 = vmatmul.f32.gmra.mxu0 %v394
        %v413 = vpop.f32.mrf.mxu0
        %v414 = vadd.f32 0.0, %v413
        %415 = vdwg.mxu0
        %v416 = vadd.f32 %v395, %v414
        %417 = vst [vmem:[#allocation2] sm:$0xff] %v416
        // Predicated region
        $region57: #{tpu_custom_call.1} parent=35 // pred_check
          %p418 = pneg %p300
        $region58: #{tpu_custom_call.1} parent=35 // pred_check_branch
          %420 = sbr.rel (%p418) target = $region60
        $region59: #{tpu_custom_call.1} parent=35 // pred_region
          %v421 = vld [vmem:[#allocation2] sm:$0xff]
          %422 = vst [vmem:[%s298] sm:$0xff] %v421
        $region60: #{tpu_custom_call.1} parent=35 // pred_fallthru
          _
        %s423 = sand.u32 %s147, 1
        %s424 = scalar_lea.sflag [#allocation5], %s423
        %s425 = sand.u32 %s147, 1
        %s426 = smul.addr %s425, 8
        %s427 = scalar_lea.vmem [#allocation11], %s426
        // Predicated region
        $region61: #{tpu_custom_call.1} parent=35 // pred_check
          %p428 = pneg %p157
        $region62: #{tpu_custom_call.1} parent=35 // pred_check_branch
          %430 = sbr.rel (%p428) target = $region64
        $region63: #{tpu_custom_call.1} parent=35 // pred_region
          %432 = vsyncadd %s424, 0
          %s433 = smul.addr %s27, 8
          %s434 = scalar_lea.hbm %s4, %s433
          %s436 = sshll.u32 %s427, 4
          %s437 = int_to_ptr.vmem [resolvable:$true] %s436
          %s438 = sshll.u32 %s434, 4
          %s439 = int_to_ptr.hbm [resolvable:$true] %s438
          %441 = dma.vmem_to_hbm [thread:$0]  %s437, 128, %s439, %s424
        $region64: #{tpu_custom_call.1} parent=35 // pred_fallthru
          _
      $region36: #{tpu_custom_call.1} parent=5 // pred_fallthru
        _
      %p442 = scmp.le.s32.totalorder 2, %s18
      // Predicated region
      $region65: #{tpu_custom_call.1} parent=5 // pred_check
        %p443 = pneg %p442
      $region66: #{tpu_custom_call.1} parent=5 // pred_check_branch
        %445 = sbr.rel (%p443) target = $region68
      $region67: #{tpu_custom_call.1} parent=5 // pred_region
        %s446 = ssub.s32 %s18, 2
        // Predicated region
        $region69: #{tpu_custom_call.1} parent=67 // pred_check
          %p447 = pneg %p163
        $region70: #{tpu_custom_call.1} parent=67 // pred_check_branch
          %449 = sbr.rel (%p447) target = $region72
        $region71: #{tpu_custom_call.1} parent=67 // pred_region
          %s450 = sand.u32 %s148, 1
          %s451 = scalar_lea.sflag [#allocation5], %s450
          %s452 = sand.u32 %s148, 1
          %s453 = smul.addr %s452, 8
          %s454 = scalar_lea.vmem [#allocation11], %s453
          %456 = dma.done %s451, 128
        $region72: #{tpu_custom_call.1} parent=67 // pred_fallthru
          _
      $region68: #{tpu_custom_call.1} parent=5 // pred_fallthru
        _
    $region6: #{tpu_custom_call.1} parent=1 // loop_footer
      %s22 = sadd.s32 1, %s18
    $region7: #{tpu_custom_call.1} parent=1 // loop_footer_branch
      %17 = sbr.rel target = $region3
    $region8: #{tpu_custom_call.1} parent=1 // loop_exit
      _
    %457 = vsyncpa [#allocation4], 1
    %s458 = scalar_lea.sflag [#allocation4], 1
    %459 = vsyncpa %s458, 1
    %460 = vsyncpa [#allocation7], 1
    %461 = vsyncpa [#allocation10], 1
    %462 = vsyncpa [#allocation5], 1
    %s463 = scalar_lea.sflag [#allocation5], 1
    %464 = vsyncpa %s463, 1

</llo_original>
